<compile_context>
chip_gen: v5e
topology: v5e:2x2
jax: 0.10.0
libtpu: 0.0.40
codegen_flags: <defaults>
</compile_context>

<pallas_src>
import functools
import math

import numpy as np

import jax
import jax.numpy as jnp
from jax.experimental import pallas as pl
from jax.experimental.pallas import tpu as pltpu

LANES = 128
MAX_ROW_TILE = 2048      # sublane rows per grid step (2048*128 = 256K pixels)

_COS30 = math.cos(math.pi / 6.0)   # 0.86602540378
_SIN30 = 0.5


# ---------------------------------------------------------------------------
# HCP (point group 622) proper-rotation symmetry quaternions (w, x, y, z).
# Used only by the pure-JAX reference; the kernel hard-codes the zero pattern.
# ---------------------------------------------------------------------------
def make_hcp_syms() -> np.ndarray:
    syms = []
    for k in range(6):                       # rotations about c-axis by k*60 deg
        half = 0.5 * k * (math.pi / 3.0)
        syms.append([math.cos(half), 0.0, 0.0, math.sin(half)])
    for k in range(6):                       # 2-fold rotations about basal axes
        phi = k * (math.pi / 6.0)
        syms.append([0.0, math.cos(phi), math.sin(phi), 0.0])
    arr = np.asarray(syms, dtype=np.float64)
    arr[np.abs(arr) < 1e-12] = 0.0
    arr[np.abs(arr - 1.0) < 1e-12] = 1.0
    arr[np.abs(arr + 1.0) < 1e-12] = -1.0
    return arr.astype(np.float32)            # (12, 4)


_HCP_SYMS = make_hcp_syms()


# ---------------------------------------------------------------------------
# arccos on [0, 1]: Abramowitz & Stegun 4.4.46, |abs error| <= 2e-8.
#   acos(x) = sqrt(1 - x) * (a0 + a1 x + ... + a7 x^7)
# ---------------------------------------------------------------------------
def _acos01(x):
    p = jnp.float32(-0.0012624911)
    p = p * x + jnp.float32(0.0066700901)
    p = p * x + jnp.float32(-0.0170881256)
    p = p * x + jnp.float32(0.0308918810)
    p = p * x + jnp.float32(-0.0501743046)
    p = p * x + jnp.float32(0.0889789874)
    p = p * x + jnp.float32(-0.2145988016)
    p = p * x + jnp.float32(1.5707963050)
    return jnp.sqrt(jnp.maximum(1.0 - x, 0.0)) * p


# ---------------------------------------------------------------------------
# Pallas kernel.
#   sr_ref / hr_ref : VMEM (4, row_tile, 128)   (batch dim squeezed)
#   out_ref         : VMEM (8, 128) f32, partial sum of angles for this block
# ---------------------------------------------------------------------------
def _misorientation_kernel(sr_ref, hr_ref, out_ref, *, hw, need_mask):
    row_tile = sr_ref.shape[1]

    sw = sr_ref[0].astype(jnp.float32)       # (row_tile, 128)
    sx = sr_ref[1].astype(jnp.float32)
    sy = sr_ref[2].astype(jnp.float32)
    sz = sr_ref[3].astype(jnp.float32)

    # activation: normalize predicted quats along the quat dim (rsqrt -> EUP)
    inv = jax.lax.rsqrt(sw * sw + sx * sx + sy * sy + sz * sz + 1e-12)
    sw, sx, sy, sz = sw * inv, sx * inv, sy * inv, sz * inv

    qw = hr_ref[0].astype(jnp.float32)
    qx = hr_ref[1].astype(jnp.float32)
    qy = hr_ref[2].astype(jnp.float32)
    qz = hr_ref[3].astype(jnp.float32)

    # d = conj(hr) (x) sr_hat  -- single Hamilton product.
    # Adjoint identity (exact): <sr_hat, hr (x) s_k> == <conj(hr)(x)sr_hat, s_k>.
    dw = qw * sw + qx * sx + qy * sy + qz * sz
    dx = qw * sx - qx * sw - qy * sz + qz * sy
    dy = qw * sy + qx * sz - qy * sw - qz * sx
    dz = qw * sz - qx * sy + qy * sx - qz * sw

    C = jnp.float32(_COS30)
    S = jnp.float32(_SIN30)

    # c-axis rotations (0,60,...,300 deg): scores involve only (dw, dz).
    # Scaled products are shared across the +/- symmetry pairs.
    a, b = C * dw, S * dz
    c_, d_ = S * dw, C * dz
    best = jnp.maximum(jnp.abs(dw), jnp.abs(dz))
    best = jnp.maximum(best, jnp.abs(a + b))
    best = jnp.maximum(best, jnp.abs(a - b))
    best = jnp.maximum(best, jnp.abs(c_ + d_))
    best = jnp.maximum(best, jnp.abs(c_ - d_))
    # basal-plane 2-fold rotations: scores involve only (dx, dy).
    a, b = C * dx, S * dy
    c_, d_ = S * dx, C * dy
    best = jnp.maximum(best, jnp.abs(dx))
    best = jnp.maximum(best, jnp.abs(dy))
    best = jnp.maximum(best, jnp.abs(a + b))
    best = jnp.maximum(best, jnp.abs(a - b))
    best = jnp.maximum(best, jnp.abs(c_ + d_))
    best = jnp.maximum(best, jnp.abs(c_ - d_))

    ang = 2.0 * _acos01(jnp.minimum(best, 1.0))            # (row_tile, 128)

    if need_mask:
        # Only the last pixel-block can contain padded / out-of-bounds rows.
        i = pl.program_id(1)
        is_last = i == pl.num_programs(1) - 1

        @pl.when(jnp.logical_not(is_last))
        def _full():
            out_ref[...] = jnp.sum(ang.reshape(-1, 8, LANES), axis=0)

        @pl.when(is_last)
        def _tail():
            row = jax.lax.broadcasted_iota(jnp.int32, (row_tile, LANES), 0)
            lane = jax.lax.broadcasted_iota(jnp.int32, (row_tile, LANES), 1)
            pix = (i * row_tile + row) * LANES + lane
            zeroed = jnp.where(pix < hw, ang, 0.0)          # also kills NaN tails
            out_ref[...] = jnp.sum(zeroed.reshape(-1, 8, LANES), axis=0)
    else:
        out_ref[...] = jnp.sum(ang.reshape(-1, 8, LANES), axis=0)


# ---------------------------------------------------------------------------
# Wrapper: layout plumbing (no transpose, no full-array pad) + final mean.
# ---------------------------------------------------------------------------
def misorientation_loss(sr, hr, *, max_row_tile=MAX_ROW_TILE):
    n, c, h, w = sr.shape
    assert c == 4, "quaternion channel dim must be 4"
    hw = h * w
    m = n * hw

    # Map each batch's pixels onto (rows, 128) lanes.
    r_total = -(-hw // LANES)                 # ceil(hw / 128)
    r_pad = ((r_total + 7) // 8) * 8          # sublane-align (blocks never exceed dim)
    row_tile = min(max_row_tile, r_pad)       # multiple of 8 by construction
    num_blocks = -(-r_pad // row_tile)
    need_mask = (num_blocks * row_tile * LANES) != hw

    sr_f = sr.reshape(n, 4, hw)               # contiguous, no transpose
    hr_f = hr.reshape(n, 4, hw)
    pad_px = r_pad * LANES - hw
    if pad_px:
        # TODO(synk): only hit when H*W is not a multiple of 1024 (8*128); this
        # costs one extra HBM copy. Padded pixels are zero and masked in-kernel.
        sr_f = jnp.pad(sr_f, ((0, 0), (0, 0), (0, pad_px)))
        hr_f = jnp.pad(hr_f, ((0, 0), (0, 0), (0, pad_px)))

    sr4 = sr_f.reshape(n, 4, r_pad, LANES)
    hr4 = hr_f.reshape(n, 4, r_pad, LANES)

    kernel = functools.partial(_misorientation_kernel, hw=hw, need_mask=need_mask)

    partials = pl.pallas_call(
        kernel,
        out_shape=jax.ShapeDtypeStruct((n, num_blocks, 8, LANES), jnp.float32),
        grid=(n, num_blocks),
        in_specs=[
            pl.BlockSpec((None, 4, row_tile, LANES), lambda b, i: (b, 0, i, 0)),
            pl.BlockSpec((None, 4, row_tile, LANES), lambda b, i: (b, 0, i, 0)),
        ],
        out_specs=pl.BlockSpec((None, None, 8, LANES), lambda b, i: (b, i, 0, 0)),
        compiler_params=pltpu.CompilerParams(
            dimension_semantics=("parallel", "parallel"),
            vmem_limit_bytes=32 * 1024 * 1024,
        ),
    )(sr4, hr4)

    return jnp.sum(partials) / jnp.float32(m)


# ---------------------------------------------------------------------------
# Pure-JAX reference (original fully-expanded formulation) for a sanity check.
# ---------------------------------------------------------------------------
def misorientation_loss_ref(sr, hr, syms):
    q1 = sr / jnp.sqrt(jnp.sum(sr * sr, axis=1, keepdims=True) + 1e-12)
    q1 = jnp.moveaxis(q1, 1, -1).reshape(-1, 4)
    q2 = jnp.moveaxis(hr, 1, -1).reshape(-1, 4)
    w1, x1, y1, z1 = (q2[:, None, i] for i in range(4))
    w2, x2, y2, z2 = (syms[None, :, i] for i in range(4))
    qw = w1 * w2 - x1 * x2 - y1 * y2 - z1 * z2
    qx = w1 * x2 + x1 * w2 + y1 * z2 - z1 * y2
    qy = w1 * y2 - x1 * z2 + y1 * w2 + z1 * x2
    qz = w1 * z2 + x1 * y2 - y1 * x2 + z1 * w2
    dots = jnp.abs(q1[:, None, 0] * qw + q1[:, None, 1] * qx
                   + q1[:, None, 2] * qy + q1[:, None, 3] * qz)
    best = jnp.minimum(jnp.max(dots, axis=1), 1.0)
    return jnp.mean(2.0 * jnp.arccos(best))


if __name__ == "__main__":
    key = jax.random.PRNGKey(0)
    k1, k2 = jax.random.split(key)
    N, C, H, W = 2, 4, 16, 16

    sr = jax.random.normal(k1, (N, C, H, W), jnp.float32)          # raw net output
    hr = jax.random.normal(k2, (N, C, H, W), jnp.float32)
    hr = hr / jnp.sqrt(jnp.sum(hr * hr, axis=1, keepdims=True))    # unit ground truth

    loss = jax.block_until_ready(misorientation_loss(sr, hr))
    ref = jax.block_until_ready(misorientation_loss_ref(sr, hr, jnp.asarray(_HCP_SYMS)))
    assert jnp.allclose(loss, ref, rtol=1e-3, atol=1e-3), (float(loss), float(ref))

    print("KERNEL_OK")
</pallas_src>

<mosaic_0001>
module attributes {stable_mosaic.version = 11 : i64} {
  func.func @_misorientation_kernel(%arg0: i32, %arg1: i32, %arg2: memref<1x4x8x128xf32, #tpu.memory_space<vmem>>, %arg3: memref<1x4x8x128xf32, #tpu.memory_space<vmem>>, %arg4: memref<1x1x8x128xf32, #tpu.memory_space<vmem>>) attributes {dimension_semantics = [#tpu.dimension_semantics<parallel>, #tpu.dimension_semantics<parallel>], iteration_bounds = array<i64: 2, 1>, scalar_prefetch = 0 : i64, scratch_operands = 0 : i64, tpu.core_type = #tpu.core_type<tc>, window_params = [{transform_indices = @transform_0, window_bounds = array<i64: 1, 4, 8, 128>}, {transform_indices = @transform_1, window_bounds = array<i64: 1, 4, 8, 128>}, {transform_indices = @transform_2, window_bounds = array<i64: 1, 1, 8, 128>}]} {
    %c0 = arith.constant 0 : index
    %c0_0 = arith.constant 0 : index
    %c0_1 = arith.constant 0 : index
    %c0_2 = arith.constant 0 : index
    %0 = vector.load %arg2[%c0, %c0_0, %c0_1, %c0_2] : memref<1x4x8x128xf32, #tpu.memory_space<vmem>>, vector<1x1x8x128xf32>
    %1 = vector.shape_cast %0 : vector<1x1x8x128xf32> to vector<8x128xf32>
    %c0_3 = arith.constant 0 : index
    %c1 = arith.constant 1 : index
    %c0_4 = arith.constant 0 : index
    %c0_5 = arith.constant 0 : index
    %2 = vector.load %arg2[%c0_3, %c1, %c0_4, %c0_5] : memref<1x4x8x128xf32, #tpu.memory_space<vmem>>, vector<1x1x8x128xf32>
    %3 = vector.shape_cast %2 : vector<1x1x8x128xf32> to vector<8x128xf32>
    %c0_6 = arith.constant 0 : index
    %c2 = arith.constant 2 : index
    %c0_7 = arith.constant 0 : index
    %c0_8 = arith.constant 0 : index
    %4 = vector.load %arg2[%c0_6, %c2, %c0_7, %c0_8] : memref<1x4x8x128xf32, #tpu.memory_space<vmem>>, vector<1x1x8x128xf32>
    %5 = vector.shape_cast %4 : vector<1x1x8x128xf32> to vector<8x128xf32>
    %c0_9 = arith.constant 0 : index
    %c3 = arith.constant 3 : index
    %c0_10 = arith.constant 0 : index
    %c0_11 = arith.constant 0 : index
    %6 = vector.load %arg2[%c0_9, %c3, %c0_10, %c0_11] : memref<1x4x8x128xf32, #tpu.memory_space<vmem>>, vector<1x1x8x128xf32>
    %7 = vector.shape_cast %6 : vector<1x1x8x128xf32> to vector<8x128xf32>
    %8 = arith.mulf %1, %1 : vector<8x128xf32>
    %9 = arith.mulf %3, %3 : vector<8x128xf32>
    %10 = arith.addf %8, %9 : vector<8x128xf32>
    %11 = arith.mulf %5, %5 : vector<8x128xf32>
    %12 = arith.addf %10, %11 : vector<8x128xf32>
    %13 = arith.mulf %7, %7 : vector<8x128xf32>
    %14 = arith.addf %12, %13 : vector<8x128xf32>
    %cst = arith.constant 9.99999996E-13 : f32
    %15 = vector.broadcast %cst : f32 to vector<8x128xf32>
    %16 = arith.addf %14, %15 : vector<8x128xf32>
    %17 = math.rsqrt %16 : vector<8x128xf32>
    %18 = arith.mulf %1, %17 : vector<8x128xf32>
    %19 = arith.mulf %3, %17 : vector<8x128xf32>
    %20 = arith.mulf %5, %17 : vector<8x128xf32>
    %21 = arith.mulf %7, %17 : vector<8x128xf32>
    %c0_12 = arith.constant 0 : index
    %c0_13 = arith.constant 0 : index
    %c0_14 = arith.constant 0 : index
    %c0_15 = arith.constant 0 : index
    %22 = vector.load %arg3[%c0_12, %c0_13, %c0_14, %c0_15] : memref<1x4x8x128xf32, #tpu.memory_space<vmem>>, vector<1x1x8x128xf32>
    %23 = vector.shape_cast %22 : vector<1x1x8x128xf32> to vector<8x128xf32>
    %c0_16 = arith.constant 0 : index
    %c1_17 = arith.constant 1 : index
    %c0_18 = arith.constant 0 : index
    %c0_19 = arith.constant 0 : index
    %24 = vector.load %arg3[%c0_16, %c1_17, %c0_18, %c0_19] : memref<1x4x8x128xf32, #tpu.memory_space<vmem>>, vector<1x1x8x128xf32>
    %25 = vector.shape_cast %24 : vector<1x1x8x128xf32> to vector<8x128xf32>
    %c0_20 = arith.constant 0 : index
    %c2_21 = arith.constant 2 : index
    %c0_22 = arith.constant 0 : index
    %c0_23 = arith.constant 0 : index
    %26 = vector.load %arg3[%c0_20, %c2_21, %c0_22, %c0_23] : memref<1x4x8x128xf32, #tpu.memory_space<vmem>>, vector<1x1x8x128xf32>
    %27 = vector.shape_cast %26 : vector<1x1x8x128xf32> to vector<8x128xf32>
    %c0_24 = arith.constant 0 : index
    %c3_25 = arith.constant 3 : index
    %c0_26 = arith.constant 0 : index
    %c0_27 = arith.constant 0 : index
    %28 = vector.load %arg3[%c0_24, %c3_25, %c0_26, %c0_27] : memref<1x4x8x128xf32, #tpu.memory_space<vmem>>, vector<1x1x8x128xf32>
    %29 = vector.shape_cast %28 : vector<1x1x8x128xf32> to vector<8x128xf32>
    %30 = arith.mulf %23, %18 : vector<8x128xf32>
    %31 = arith.mulf %25, %19 : vector<8x128xf32>
    %32 = arith.addf %30, %31 : vector<8x128xf32>
    %33 = arith.mulf %27, %20 : vector<8x128xf32>
    %34 = arith.addf %32, %33 : vector<8x128xf32>
    %35 = arith.mulf %29, %21 : vector<8x128xf32>
    %36 = arith.addf %34, %35 : vector<8x128xf32>
    %37 = arith.mulf %23, %19 : vector<8x128xf32>
    %38 = arith.mulf %25, %18 : vector<8x128xf32>
    %39 = arith.subf %37, %38 : vector<8x128xf32>
    %40 = arith.mulf %27, %21 : vector<8x128xf32>
    %41 = arith.subf %39, %40 : vector<8x128xf32>
    %42 = arith.mulf %29, %20 : vector<8x128xf32>
    %43 = arith.addf %41, %42 : vector<8x128xf32>
    %44 = arith.mulf %23, %20 : vector<8x128xf32>
    %45 = arith.mulf %25, %21 : vector<8x128xf32>
    %46 = arith.addf %44, %45 : vector<8x128xf32>
    %47 = arith.mulf %27, %18 : vector<8x128xf32>
    %48 = arith.subf %46, %47 : vector<8x128xf32>
    %49 = arith.mulf %29, %19 : vector<8x128xf32>
    %50 = arith.subf %48, %49 : vector<8x128xf32>
    %51 = arith.mulf %23, %21 : vector<8x128xf32>
    %52 = arith.mulf %25, %20 : vector<8x128xf32>
    %53 = arith.subf %51, %52 : vector<8x128xf32>
    %54 = arith.mulf %27, %19 : vector<8x128xf32>
    %55 = arith.addf %53, %54 : vector<8x128xf32>
    %56 = arith.mulf %29, %18 : vector<8x128xf32>
    %57 = arith.subf %55, %56 : vector<8x128xf32>
    %cst_28 = arith.constant 0.866025388 : f32
    %58 = vector.broadcast %cst_28 : f32 to vector<8x128xf32>
    %59 = arith.mulf %58, %36 : vector<8x128xf32>
    %cst_29 = arith.constant 5.000000e-01 : f32
    %60 = vector.broadcast %cst_29 : f32 to vector<8x128xf32>
    %61 = arith.mulf %60, %57 : vector<8x128xf32>
    %cst_30 = arith.constant 5.000000e-01 : f32
    %62 = vector.broadcast %cst_30 : f32 to vector<8x128xf32>
    %63 = arith.mulf %62, %36 : vector<8x128xf32>
    %cst_31 = arith.constant 0.866025388 : f32
    %64 = vector.broadcast %cst_31 : f32 to vector<8x128xf32>
    %65 = arith.mulf %64, %57 : vector<8x128xf32>
    %66 = math.absf %36 : vector<8x128xf32>
    %67 = math.absf %57 : vector<8x128xf32>
    %68 = arith.maximumf %66, %67 : vector<8x128xf32>
    %69 = arith.addf %59, %61 : vector<8x128xf32>
    %70 = math.absf %69 : vector<8x128xf32>
    %71 = arith.maximumf %68, %70 : vector<8x128xf32>
    %72 = arith.subf %59, %61 : vector<8x128xf32>
    %73 = math.absf %72 : vector<8x128xf32>
    %74 = arith.maximumf %71, %73 : vector<8x128xf32>
    %75 = arith.addf %63, %65 : vector<8x128xf32>
    %76 = math.absf %75 : vector<8x128xf32>
    %77 = arith.maximumf %74, %76 : vector<8x128xf32>
    %78 = arith.subf %63, %65 : vector<8x128xf32>
    %79 = math.absf %78 : vector<8x128xf32>
    %80 = arith.maximumf %77, %79 : vector<8x128xf32>
    %cst_32 = arith.constant 0.866025388 : f32
    %81 = vector.broadcast %cst_32 : f32 to vector<8x128xf32>
    %82 = arith.mulf %81, %43 : vector<8x128xf32>
    %cst_33 = arith.constant 5.000000e-01 : f32
    %83 = vector.broadcast %cst_33 : f32 to vector<8x128xf32>
    %84 = arith.mulf %83, %50 : vector<8x128xf32>
    %cst_34 = arith.constant 5.000000e-01 : f32
    %85 = vector.broadcast %cst_34 : f32 to vector<8x128xf32>
    %86 = arith.mulf %85, %43 : vector<8x128xf32>
    %cst_35 = arith.constant 0.866025388 : f32
    %87 = vector.broadcast %cst_35 : f32 to vector<8x128xf32>
    %88 = arith.mulf %87, %50 : vector<8x128xf32>
    %89 = math.absf %43 : vector<8x128xf32>
    %90 = arith.maximumf %80, %89 : vector<8x128xf32>
    %91 = math.absf %50 : vector<8x128xf32>
    %92 = arith.maximumf %90, %91 : vector<8x128xf32>
    %93 = arith.addf %82, %84 : vector<8x128xf32>
    %94 = math.absf %93 : vector<8x128xf32>
    %95 = arith.maximumf %92, %94 : vector<8x128xf32>
    %96 = arith.subf %82, %84 : vector<8x128xf32>
    %97 = math.absf %96 : vector<8x128xf32>
    %98 = arith.maximumf %95, %97 : vector<8x128xf32>
    %99 = arith.addf %86, %88 : vector<8x128xf32>
    %100 = math.absf %99 : vector<8x128xf32>
    %101 = arith.maximumf %98, %100 : vector<8x128xf32>
    %102 = arith.subf %86, %88 : vector<8x128xf32>
    %103 = math.absf %102 : vector<8x128xf32>
    %104 = arith.maximumf %101, %103 : vector<8x128xf32>
    %cst_36 = arith.constant 1.000000e+00 : f32
    %105 = vector.broadcast %cst_36 : f32 to vector<8x128xf32>
    %106 = arith.minimumf %104, %105 : vector<8x128xf32>
    %cst_37 = arith.constant -0.0012624911 : f32
    %107 = vector.broadcast %cst_37 : f32 to vector<8x128xf32>
    %108 = arith.mulf %107, %106 : vector<8x128xf32>
    %cst_38 = arith.constant 6.670090e-03 : f32
    %109 = vector.broadcast %cst_38 : f32 to vector<8x128xf32>
    %110 = arith.addf %108, %109 : vector<8x128xf32>
    %111 = arith.mulf %110, %106 : vector<8x128xf32>
    %cst_39 = arith.constant -0.0170881264 : f32
    %112 = vector.broadcast %cst_39 : f32 to vector<8x128xf32>
    %113 = arith.addf %111, %112 : vector<8x128xf32>
    %114 = arith.mulf %113, %106 : vector<8x128xf32>
    %cst_40 = arith.constant 0.0308918804 : f32
    %115 = vector.broadcast %cst_40 : f32 to vector<8x128xf32>
    %116 = arith.addf %114, %115 : vector<8x128xf32>
    %117 = arith.mulf %116, %106 : vector<8x128xf32>
    %cst_41 = arith.constant -0.0501743034 : f32
    %118 = vector.broadcast %cst_41 : f32 to vector<8x128xf32>
    %119 = arith.addf %117, %118 : vector<8x128xf32>
    %120 = arith.mulf %119, %106 : vector<8x128xf32>
    %cst_42 = arith.constant 0.0889789909 : f32
    %121 = vector.broadcast %cst_42 : f32 to vector<8x128xf32>
    %122 = arith.addf %120, %121 : vector<8x128xf32>
    %123 = arith.mulf %122, %106 : vector<8x128xf32>
    %cst_43 = arith.constant -0.214598805 : f32
    %124 = vector.broadcast %cst_43 : f32 to vector<8x128xf32>
    %125 = arith.addf %123, %124 : vector<8x128xf32>
    %126 = arith.mulf %125, %106 : vector<8x128xf32>
    %cst_44 = arith.constant 1.57079625 : f32
    %127 = vector.broadcast %cst_44 : f32 to vector<8x128xf32>
    %128 = arith.addf %126, %127 : vector<8x128xf32>
    %cst_45 = arith.constant 1.000000e+00 : f32
    %129 = vector.broadcast %cst_45 : f32 to vector<8x128xf32>
    %130 = arith.subf %129, %106 : vector<8x128xf32>
    %cst_46 = arith.constant 0.000000e+00 : f32
    %131 = vector.broadcast %cst_46 : f32 to vector<8x128xf32>
    %132 = arith.maximumf %130, %131 : vector<8x128xf32>
    %133 = math.sqrt %132 : vector<8x128xf32>
    %134 = arith.mulf %133, %128 : vector<8x128xf32>
    %cst_47 = arith.constant 2.000000e+00 : f32
    %135 = vector.broadcast %cst_47 : f32 to vector<8x128xf32>
    %136 = arith.mulf %135, %134 : vector<8x128xf32>
    %c0_i32 = arith.constant 0 : i32
    %137 = arith.cmpi eq, %arg1, %c0_i32 : i32
    %true = arith.constant true
    %138 = arith.xori %137, %true : i1
    %139 = arith.extui %138 : i1 to i32
    %c0_i32_48 = arith.constant 0 : i32
    %140 = arith.cmpi ne, %139, %c0_i32_48 : i32
    scf.if %140 {
      %143 = vector.shape_cast %136 : vector<8x128xf32> to vector<1x8x128xf32>
      %cst_50 = arith.constant dense<0.000000e+00> : vector<8x128xf32>
      %144 = vector.multi_reduction <add>, %143, %cst_50 [0] : vector<1x8x128xf32> to vector<8x128xf32>
      %c0_51 = arith.constant 0 : index
      %c0_52 = arith.constant 0 : index
      %c0_53 = arith.constant 0 : index
      %c0_54 = arith.constant 0 : index
      %145 = vector.load %arg4[%c0_51, %c0_52, %c0_53, %c0_54] : memref<1x1x8x128xf32, #tpu.memory_space<vmem>>, vector<1x1x8x128xf32>
      %146 = vector.shape_cast %145 : vector<1x1x8x128xf32> to vector<8x128xf32>
      %147 = vector.shape_cast %144 : vector<8x128xf32> to vector<1x1x8x128xf32>
      tpu.vector_store %arg4[%c0_51, %c0_52, %c0_53, %c0_54], %147 {strides = array<i32>} : memref<1x1x8x128xf32, #tpu.memory_space<vmem>>, vector<1x1x8x128xf32>,
    } else {
    }
    %141 = arith.extui %137 : i1 to i32
    %c0_i32_49 = arith.constant 0 : i32
    %142 = arith.cmpi ne, %141, %c0_i32_49 : i32
    scf.if %142 {
      %143 = tpu.iota {dimensions = array<i32: 0>} : vector<8x128xi32>
      %144 = tpu.iota {dimensions = array<i32: 1>} : vector<8x128xi32>
      %c8_i32 = arith.constant 8 : i32
      %145 = arith.muli %arg1, %c8_i32 : i32
      %146 = vector.broadcast %145 : i32 to vector<8x128xi32>
      %147 = arith.addi %146, %143 : vector<8x128xi32>
      %c128_i32 = arith.constant 128 : i32
      %148 = vector.broadcast %c128_i32 : i32 to vector<8x128xi32>
      %149 = arith.muli %147, %148 : vector<8x128xi32>
      %150 = arith.addi %149, %144 : vector<8x128xi32>
      %c256_i32 = arith.constant 256 : i32
      %151 = vector.broadcast %c256_i32 : i32 to vector<8x128xi32>
      %152 = arith.cmpi slt, %150, %151 : vector<8x128xi32>
      %cst_50 = arith.constant 0.000000e+00 : f32
      %153 = vector.broadcast %cst_50 : f32 to vector<8x128xf32>
      %154 = arith.select %152, %136, %153 : vector<8x128xi1>, vector<8x128xf32>
      %155 = vector.shape_cast %154 : vector<8x128xf32> to vector<1x8x128xf32>
      %cst_51 = arith.constant dense<0.000000e+00> : vector<8x128xf32>
      %156 = vector.multi_reduction <add>, %155, %cst_51 [0] : vector<1x8x128xf32> to vector<8x128xf32>
      %c0_52 = arith.constant 0 : index
      %c0_53 = arith.constant 0 : index
      %c0_54 = arith.constant 0 : index
      %c0_55 = arith.constant 0 : index
      %157 = vector.load %arg4[%c0_52, %c0_53, %c0_54, %c0_55] : memref<1x1x8x128xf32, #tpu.memory_space<vmem>>, vector<1x1x8x128xf32>
      %158 = vector.shape_cast %157 : vector<1x1x8x128xf32> to vector<8x128xf32>
      %159 = vector.shape_cast %156 : vector<8x128xf32> to vector<1x1x8x128xf32>
      tpu.vector_store %arg4[%c0_52, %c0_53, %c0_54, %c0_55], %159 {strides = array<i32>} : memref<1x1x8x128xf32, #tpu.memory_space<vmem>>, vector<1x1x8x128xf32>,
    } else {
    }
    return
  }
  func.func @transform_0(%arg0: i32, %arg1: i32) -> (i32, i32, i32, i32) {
    %c0_i32 = arith.constant 0 : i32
    %c0_i32_0 = arith.constant 0 : i32
    %c0_i32_1 = arith.constant 0 : i32
    return %arg0, %c0_i32, %arg1, %c0_i32_0 : i32, i32, i32, i32
  }
  func.func @transform_1(%arg0: i32, %arg1: i32) -> (i32, i32, i32, i32) {
    %c0_i32 = arith.constant 0 : i32
    %c0_i32_0 = arith.constant 0 : i32
    %c0_i32_1 = arith.constant 0 : i32
    return %arg0, %c0_i32, %arg1, %c0_i32_0 : i32, i32, i32, i32
  }
  func.func @transform_2(%arg0: i32, %arg1: i32) -> (i32, i32, i32, i32) {
    %c0_i32 = arith.constant 0 : i32
    %c0_i32_0 = arith.constant 0 : i32
    %c0_i32_1 = arith.constant 0 : i32
    return %arg0, %arg1, %c0_i32, %c0_i32_0 : i32, i32, i32, i32
  }
}

</mosaic_0001>

<llo_original>
// kernel: tpu_custom_call.1
$region0: #{tpu_custom_call.1}
  #allocation0 [shape = 'u32[]', space=smem, size = 0x4, offset = 0x4, fixed_abs, tag = 'smem constant byte address 0x4 - core index']
  #allocation1 [shape = 'u32[72,128]{1,0:T(1,128)}', space=vmem, size = 0x9000, scoped, tag = 'internal scratch']
  %s0 = inlined_call_operand.hbm [shape: f32[2,4,8,128], index: 0, kind: input, shape index: {}]
  %s1 = inlined_call_operand.hbm [shape: f32[2,4,8,128], index: 1, kind: input, shape index: {}]
  %s2 = inlined_call_operand.hbm [shape: f32[2,1,8,128], index: 2, kind: output, shape index: {}]
  %s3 = sld [smem:[#allocation0]]
  $region57: #{tpu_custom_call.1} parent=0
    _
  %s5 = ssub.s32 1, %s3
  %s6 = scalar_select 0, %s5, %s3
  $region1: #{tpu_custom_call.1} parent=0
    #allocation2 [shape = 'u8[32768]{0}', space=vmem, size = 0x8000, scoped, tag = 'input window, operand 0']
    #allocation3 [shape = 's32[2]{0}', space=sflag, size = 0x8, scoped, tag = 'scoped memory for tpu_custom_call.1']
    #allocation4 [shape = 's32[2]{0}', space=sflag, size = 0x8, scoped, tag = 'scoped memory for tpu_custom_call.1']
    #allocation5 [shape = 'u8[32768]{0}', space=vmem, size = 0x8000, scoped, tag = 'input window, operand 1']
    #allocation6 [shape = 's32[2]{0}', space=sflag, size = 0x8, scoped, tag = 'scoped memory for tpu_custom_call.1']
    #allocation7 [shape = 'u8[8192]{0}', space=vmem, size = 0x2000, scoped, tag = 'output window, operand 0']
    %7 = vsyncpa [#allocation3], 0
    %s8 = scalar_lea.sflag [#allocation3], 1
    %9 = vsyncpa %s8, 0
    %10 = vsyncpa [#allocation6], 0
    %s11 = scalar_lea.sflag [#allocation6], 1
    %12 = vsyncpa %s11, 0
    %13 = vsyncpa [#allocation4], 0
    %s14 = scalar_lea.sflag [#allocation4], 1
    %15 = vsyncpa %s14, 0
    loop: start=0, step=1, limit=4
    $region2: #{tpu_custom_call.1} parent=1 // loop_pre_header
      _
    $region3: #{tpu_custom_call.1} parent=1 // loop_header
      %s17 = sphi 0, %s21
      %p18 = scmp.ge.s32.totalorder %s17, 4
      %s24 = sphi 0, %s36
      %s25 = sphi 0, %s32
      %s26 = sphi 0, %s24
      %s27 = sphi 0, %s25
      %s28 = sphi 0, %s26
      %s29 = sphi 0, %s27
      %s41 = sphi 0, %s43
      %s44 = sphi 0, %s41
      %s45 = sphi 0, %s44
      %s61 = sphi 0, %s45
      %s69 = sphi 0, %s71
      %s72 = sphi 0, %s69
      %s73 = sphi 0, %s72
      %s89 = sphi 0, %s73
      %s97 = sphi 0, %s99
      %s100 = sphi 0, %s97
      %s101 = sphi 0, %s100
      %s117 = sphi 0, %s101
    $region4: #{tpu_custom_call.1} parent=1 // loop_header_branch
      %20 = sbr.rel (%p18) target = $region8
    $region5: #{tpu_custom_call.1} parent=1 // loop_body
      %s22 = ssub.s32 %s17, 1
      %s23 = ssub.s32 %s17, 2
      %s30 = sadd.s32 1, %s25
      %p31 = scmp.ge.s32.totalorder %s30, 1
      %s32 = scalar_select %p31, 0, %s30
      %s33 = sadd.s32 1, %s24
      %s34 = scalar_select %p31, %s33, %s24
      %p35 = scmp.ge.s32.totalorder %s34, 2
      %s36 = scalar_select %p35, 0, %s34
      %s37 = ssub.s32 %s24, %s36
      %s38 = ssub.s32 %s25, %s32
      %s39 = sor.u32 %s37, %s38
      %p40 = scmp.eq.s32.totalorder %s39, 0
      %s42 = sadd.s32 %s41, 1
      %s43 = scalar_select %p40, %s41, %s42
      %p46 = pneg %p40
      %p47 = scmp.eq.s32.totalorder %s17, 1
      %p48 = por %p46, %p47
      %p49 = scmp.ne.s32.totalorder %s41, %s44
      %p50 = scmp.eq.s32.totalorder %s17, 0
      %p51 = por %p49, %p50
      %p52 = scmp.ne.s32.totalorder %s41, %s44
      %p53 = scmp.eq.s32.totalorder %s22, 1
      %p54 = por %p52, %p53
      %p55 = scmp.ne.s32.totalorder %s44, %s45
      %p56 = scmp.eq.s32.totalorder %s22, 0
      %p57 = por %p55, %p56
      %p58 = scmp.ne.s32.totalorder %s44, %s45
      %p59 = scmp.eq.s32.totalorder %s23, 1
      %p60 = por %p58, %p59
      %p62 = scmp.ne.s32.totalorder %s45, %s61
      %p63 = scmp.eq.s32.totalorder %s23, 0
      %p64 = por %p62, %p63
      %s65 = ssub.s32 %s24, %s36
      %s66 = ssub.s32 %s25, %s32
      %s67 = sor.u32 %s65, %s66
      %p68 = scmp.eq.s32.totalorder %s67, 0
      %s70 = sadd.s32 %s69, 1
      %s71 = scalar_select %p68, %s69, %s70
      %p74 = pneg %p68
      %p75 = scmp.eq.s32.totalorder %s17, 1
      %p76 = por %p74, %p75
      %p77 = scmp.ne.s32.totalorder %s69, %s72
      %p78 = scmp.eq.s32.totalorder %s17, 0
      %p79 = por %p77, %p78
      %p80 = scmp.ne.s32.totalorder %s69, %s72
      %p81 = scmp.eq.s32.totalorder %s22, 1
      %p82 = por %p80, %p81
      %p83 = scmp.ne.s32.totalorder %s72, %s73
      %p84 = scmp.eq.s32.totalorder %s22, 0
      %p85 = por %p83, %p84
      %p86 = scmp.ne.s32.totalorder %s72, %s73
      %p87 = scmp.eq.s32.totalorder %s23, 1
      %p88 = por %p86, %p87
      %p90 = scmp.ne.s32.totalorder %s73, %s89
      %p91 = scmp.eq.s32.totalorder %s23, 0
      %p92 = por %p90, %p91
      %s93 = ssub.s32 %s24, %s36
      %s94 = ssub.s32 %s25, %s32
      %s95 = sor.u32 %s93, %s94
      %p96 = scmp.eq.s32.totalorder %s95, 0
      %s98 = sadd.s32 %s97, 1
      %s99 = scalar_select %p96, %s97, %s98
      %p102 = pneg %p96
      %p103 = scmp.eq.s32.totalorder %s17, 1
      %p104 = por %p102, %p103
      %p105 = scmp.ne.s32.totalorder %s97, %s100
      %p106 = scmp.eq.s32.totalorder %s17, 0
      %p107 = por %p105, %p106
      %p108 = scmp.ne.s32.totalorder %s97, %s100
      %p109 = scmp.eq.s32.totalorder %s22, 1
      %p110 = por %p108, %p109
      %p111 = scmp.ne.s32.totalorder %s100, %s101
      %p112 = scmp.eq.s32.totalorder %s22, 0
      %p113 = por %p111, %p112
      %p114 = scmp.ne.s32.totalorder %s100, %s101
      %p115 = scmp.eq.s32.totalorder %s23, 1
      %p116 = por %p114, %p115
      %p118 = scmp.ne.s32.totalorder %s101, %s117
      %p119 = scmp.eq.s32.totalorder %s23, 0
      %p120 = por %p118, %p119
      %p121 = scmp.le.s32.totalorder 1, %s17
      %p122 = scmp.lt.s32.totalorder %s17, 3
      %p123 = pnand %p121, %p122
      %p124 = pneg %p123
      // Predicated region
      $region9: #{tpu_custom_call.1} parent=5 // pred_check
        _
      $region10: #{tpu_custom_call.1} parent=5 // pred_check_branch
        %126 = sbr.rel (%p123) target = $region12
      $region11: #{tpu_custom_call.1} parent=5 // pred_region
        %s127 = ssub.s32 %s17, 1
      $region12: #{tpu_custom_call.1} parent=5 // pred_fallthru
        _
      %p128 = scmp.lt.s32.totalorder %s17, 2
      // Predicated region
      $region13: #{tpu_custom_call.1} parent=5 // pred_check
        %p129 = pneg %p128
      $region14: #{tpu_custom_call.1} parent=5 // pred_check_branch
        %131 = sbr.rel (%p129) target = $region16
      $region15: #{tpu_custom_call.1} parent=5 // pred_region
        // Predicated region
        $region17: #{tpu_custom_call.1} parent=15 // pred_check
          %p132 = pneg %p51
        $region18: #{tpu_custom_call.1} parent=15 // pred_check_branch
          %134 = sbr.rel (%p132) target = $region20
        $region19: #{tpu_custom_call.1} parent=15 // pred_region
          %s135 = sand.u32 %s41, 1
          %s136 = scalar_lea.sflag [#allocation3], %s135
          %s137 = sand.u32 %s41, 1
          %s138 = smul.addr %s137, 32
          %s139 = scalar_lea.vmem [#allocation2], %s138
          %141 = vsyncadd %s136, 0
          %s142 = smul.addr %s24, 4
          %s143 = sadd.s32 %s25, %s142
          %s144 = smul.addr %s143, 8
          %s145 = scalar_lea.hbm %s0, %s144
          %s146 = sshll.u32 %s145, 4
          %s147 = int_to_ptr.hbm [resolvable:$true] %s146
          %s148 = sshll.u32 %s139, 4
          %s149 = int_to_ptr.vmem [resolvable:$true] %s148
          %154 = dma.hbm_to_vmem [thread:$0]  %s147, 512, %s149, %s136, 128, 128, 8
        $region20: #{tpu_custom_call.1} parent=15 // pred_fallthru
          _
        // Predicated region
        $region21: #{tpu_custom_call.1} parent=15 // pred_check
          %p155 = pneg %p79
        $region22: #{tpu_custom_call.1} parent=15 // pred_check_branch
          %157 = sbr.rel (%p155) target = $region24
        $region23: #{tpu_custom_call.1} parent=15 // pred_region
          %s158 = sand.u32 %s69, 1
          %s159 = scalar_lea.sflag [#allocation6], %s158
          %s160 = sand.u32 %s69, 1
          %s161 = smul.addr %s160, 32
          %s162 = scalar_lea.vmem [#allocation5], %s161
          %164 = vsyncadd %s159, 0
          %s165 = smul.addr %s24, 4
          %s166 = sadd.s32 %s25, %s165
          %s167 = smul.addr %s166, 8
          %s168 = scalar_lea.hbm %s1, %s167
          %s169 = sshll.u32 %s168, 4
          %s170 = int_to_ptr.hbm [resolvable:$true] %s169
          %s171 = sshll.u32 %s162, 4
          %s172 = int_to_ptr.vmem [resolvable:$true] %s171
          %177 = dma.hbm_to_vmem [thread:$0]  %s170, 512, %s172, %s159, 128, 128, 8
        $region24: #{tpu_custom_call.1} parent=15 // pred_fallthru
          _
      $region16: #{tpu_custom_call.1} parent=5 // pred_fallthru
        _
      %p178 = scmp.le.s32.totalorder 1, %s17
      %p179 = scmp.lt.s32.totalorder %s17, 3
      %p180 = pnand %p178, %p179
      %p181 = pneg %p180
      // Predicated region
      $region25: #{tpu_custom_call.1} parent=5 // pred_check
        _
      $region26: #{tpu_custom_call.1} parent=5 // pred_check_branch
        %183 = sbr.rel (%p180) target = $region28
      $region27: #{tpu_custom_call.1} parent=5 // pred_region
        %s184 = ssub.s32 %s17, 1
        %s185 = sand.u32 %s44, 1
        %s186 = scalar_lea.sflag [#allocation3], %s185
        %s187 = sand.u32 %s44, 1
        %s188 = smul.addr %s187, 32
        %s189 = scalar_lea.vmem [#allocation2], %s188
        // Predicated region
        $region29: #{tpu_custom_call.1} parent=27 // pred_check
          %p190 = pneg %p57
        $region30: #{tpu_custom_call.1} parent=27 // pred_check_branch
          %192 = sbr.rel (%p190) target = $region32
        $region31: #{tpu_custom_call.1} parent=27 // pred_region
          %194 = dma.done %s186, 512
        $region32: #{tpu_custom_call.1} parent=27 // pred_fallthru
          _
        %s195 = sand.u32 %s72, 1
        %s196 = scalar_lea.sflag [#allocation6], %s195
        %s197 = sand.u32 %s72, 1
        %s198 = smul.addr %s197, 32
        %s199 = scalar_lea.vmem [#allocation5], %s198
        // Predicated region
        $region33: #{tpu_custom_call.1} parent=27 // pred_check
          %p200 = pneg %p85
        $region34: #{tpu_custom_call.1} parent=27 // pred_check_branch
          %202 = sbr.rel (%p200) target = $region36
        $region35: #{tpu_custom_call.1} parent=27 // pred_region
          %204 = dma.done %s196, 512
        $region36: #{tpu_custom_call.1} parent=27 // pred_fallthru
          _
        %s205 = sand.u32 %s44, 1
        %s206 = scalar_lea.sflag [#allocation3], %s205
        %s207 = sand.u32 %s44, 1
        %s208 = smul.addr %s207, 32
        %s209 = scalar_lea.vmem [#allocation2], %s208
        %p210 = pneg %p57
        %p211 = pneg %p54
        %s212 = sand.u32 %s72, 1
        %s213 = scalar_lea.sflag [#allocation6], %s212
        %s214 = sand.u32 %s72, 1
        %s215 = smul.addr %s214, 32
        %s216 = scalar_lea.vmem [#allocation5], %s215
        %p217 = pneg %p85
        %p218 = pneg %p82
        %p219 = pneg %p113
        %p220 = pneg %p110
        %s221 = sand.u32 %s100, 1
        %s222 = scalar_lea.sflag [#allocation4], %s221
        %s223 = sand.u32 %s100, 1
        %s224 = smul.addr %s223, 8
        %s225 = scalar_lea.vmem [#allocation7], %s224
        %v226 = vld [vmem:[%s189] sm:$0xff]
        %s227 = scalar_lea.vmem %s189, 8 [#allocation2]
        %v228 = vld [vmem:[%s227] sm:$0xff]
        %s229 = scalar_lea.vmem %s189, 16 [#allocation2]
        %v230 = vld [vmem:[%s229] sm:$0xff]
        %s231 = scalar_lea.vmem %s189, 24 [#allocation2]
        %v232 = vld [vmem:[%s231] sm:$0xff]
        %v233 = vmul.f32 %v226, %v226
        %v234 = vmul.f32 %v228, %v228
        %v235 = vadd.f32 %v233, %v234
        %v236 = vmul.f32 %v230, %v230
        %v237 = vadd.f32 %v235, %v236
        %v238 = vmul.f32 %v232, %v232
        %v239 = vadd.f32 %v237, %v238
        %v240 = vadd.f32 %v239, 1e-12
        %v241 = vrsqrt.pop %v240
        %v242 = vmul.f32 %v241, %v240
        %v243 = vmul.f32 %v242, %v241
        %v244 = vmul.f32 0.5, %v243
        %v245 = vsub.f32 1.5, %v244
        %v246 = vmul.f32 %v241, %v245
        %vm247 = vweird.f32 %v240
        %vm248 = vweird.f32 %v241
        %vm249 = vmor %vm247, %vm248
        %v250 = vsel %vm249, %v241, %v246
        %v251 = vmul.f32 %v226, %v250
        %v252 = vmul.f32 %v228, %v250
        %v253 = vmul.f32 %v230, %v250
        %v254 = vmul.f32 %v232, %v250
        %v255 = vld [vmem:[%s199] sm:$0xff]
        %s256 = scalar_lea.vmem %s199, 8 [#allocation5]
        %v257 = vld [vmem:[%s256] sm:$0xff]
        %s258 = scalar_lea.vmem %s199, 16 [#allocation5]
        %v259 = vld [vmem:[%s258] sm:$0xff]
        %s260 = scalar_lea.vmem %s199, 24 [#allocation5]
        %v261 = vld [vmem:[%s260] sm:$0xff]
        %v262 = vmul.f32 %v255, %v251
        %v263 = vmul.f32 %v257, %v252
        %v264 = vadd.f32 %v262, %v263
        %v265 = vmul.f32 %v259, %v253
        %v266 = vadd.f32 %v264, %v265
        %v267 = vmul.f32 %v261, %v254
        %v268 = vadd.f32 %v266, %v267
        %v269 = vmul.f32 %v255, %v252
        %v270 = vmul.f32 %v257, %v251
        %v271 = vsub.f32 %v269, %v270
        %v272 = vmul.f32 %v259, %v254
        %v273 = vsub.f32 %v271, %v272
        %v274 = vmul.f32 %v261, %v253
        %v275 = vadd.f32 %v273, %v274
        %v276 = vmul.f32 %v255, %v253
        %v277 = vmul.f32 %v257, %v254
        %v278 = vadd.f32 %v276, %v277
        %v279 = vmul.f32 %v259, %v251
        %v280 = vsub.f32 %v278, %v279
        %v281 = vmul.f32 %v261, %v252
        %v282 = vsub.f32 %v280, %v281
        %v283 = vmul.f32 %v255, %v254
        %v284 = vmul.f32 %v257, %v253
        %v285 = vsub.f32 %v283, %v284
        %v286 = vmul.f32 %v259, %v252
        %v287 = vadd.f32 %v285, %v286
        %v288 = vmul.f32 %v261, %v251
        %v289 = vsub.f32 %v287, %v288
        %v290 = vmul.f32 %v268, 0.8660254
        %v291 = vmul.f32 %v289, 0.5
        %v292 = vmul.f32 %v268, 0.5
        %v293 = vmul.f32 %v289, 0.8660254
        %v294 = vand.u32 2147483647, %v268
        %v295 = vand.u32 2147483647, %v289
        %v296 = vmax.f32 %v294, %v295
        %v297 = vadd.f32 %v290, %v291
        %v298 = vand.u32 2147483647, %v297
        %v299 = vmax.f32 %v296, %v298
        %v300 = vsub.f32 %v290, %v291
        %v301 = vand.u32 2147483647, %v300
        %v302 = vmax.f32 %v299, %v301
        %v303 = vadd.f32 %v292, %v293
        %v304 = vand.u32 2147483647, %v303
        %v305 = vmax.f32 %v302, %v304
        %v306 = vsub.f32 %v292, %v293
        %v307 = vand.u32 2147483647, %v306
        %v308 = vmax.f32 %v305, %v307
        %v309 = vmul.f32 %v275, 0.8660254
        %v310 = vmul.f32 %v282, 0.5
        %v311 = vmul.f32 %v275, 0.5
        %v312 = vmul.f32 %v282, 0.8660254
        %v313 = vand.u32 2147483647, %v275
        %v314 = vmax.f32 %v308, %v313
        %v315 = vand.u32 2147483647, %v282
        %v316 = vmax.f32 %v314, %v315
        %v317 = vadd.f32 %v309, %v310
        %v318 = vand.u32 2147483647, %v317
        %v319 = vmax.f32 %v316, %v318
        %v320 = vsub.f32 %v309, %v310
        %v321 = vand.u32 2147483647, %v320
        %v322 = vmax.f32 %v319, %v321
        %v323 = vadd.f32 %v311, %v312
        %v324 = vand.u32 2147483647, %v323
        %v325 = vmax.f32 %v322, %v324
        %v326 = vsub.f32 %v311, %v312
        %v327 = vand.u32 2147483647, %v326
        %v328 = vmax.f32 %v325, %v327
        %v329 = vmin.f32 %v328, 1.0
        %v330 = vmul.f32 %v329, -0.0012624911
        %v331 = vadd.f32 %v330, 0.00667009
        %v332 = vmul.f32 %v331, %v329
        %v333 = vadd.f32 %v332, -0.017088126
        %v334 = vmul.f32 %v333, %v329
        %v335 = vadd.f32 %v334, 0.03089188
        %v336 = vmul.f32 %v335, %v329
        %v337 = vadd.f32 %v336, -0.050174303
        %v338 = vmul.f32 %v337, %v329
        %v339 = vadd.f32 %v338, 0.08897899
        %v340 = vmul.f32 %v339, %v329
        %v341 = vadd.f32 %v340, -0.2145988
        %v342 = vmul.f32 %v341, %v329
        %v343 = vadd.f32 %v342, 1.5707963
        %v344 = vsub.f32 1.0, %v329
        %v345 = vmax.f32 %v344, 0.0
        %v346 = vrsqrt.pop %v345
        %v347 = vmul.f32 %v346, %v345
        %v348 = vmul.f32 %v347, %v346
        %v349 = vmul.f32 0.5, %v348
        %v350 = vsub.f32 1.5, %v349
        %v351 = vmul.f32 %v346, %v350
        %v352 = vmul.f32 %v345, %v351
        %vm353 = vcmp.eq.f32.partialorder %v345, inf
        %v354 = vsel %vm353, %v345, %v352
        %vm355 = vcmp.eq.f32.partialorder %v345, 0.0
        %v356 = vand.u32 %v345, 2147483648
        %v357 = vsel %vm355, %v356, %v354
        %v358 = vmul.f32 %v357, %v343
        %v359 = vmul.f32 %v358, 2.0
        %p360 = scmp.eq.s32.totalorder %s27, 0
        %p361 = scmp.ne.s32.totalorder %s27, 0
        // Predicated region
        $region37: #{tpu_custom_call.1} parent=27 // pred_check
          %p362 = pneg %p361
        $region38: #{tpu_custom_call.1} parent=27 // pred_check_branch
          %364 = sbr.rel (%p362) target = $region40
        $region39: #{tpu_custom_call.1} parent=27 // pred_region
          %v365 = vadd.f32 %v359, 0.0
          %366 = vst [vmem:[%s225] sm:$0xff] %v365
        $region40: #{tpu_custom_call.1} parent=27 // pred_fallthru
          _
        // Predicated region
        $region41: #{tpu_custom_call.1} parent=27 // pred_check
          %p367 = pneg %p360
        $region42: #{tpu_custom_call.1} parent=27 // pred_check_branch
          %369 = sbr.rel (%p367) target = $region44
        $region43: #{tpu_custom_call.1} parent=27 // pred_region
          %v370 = vlaneseq
          %v371 = vshrl.u32 %v370, 7
          %v372 = vlaneseq
          %v373 = vand.u32 %v372, 127
          %s374 = smul.u32 %s27, 8
          %v375 = vstv %s374
          %v376 = vadd.s32 %v375, %v371
          %v377 = vmul.u32 %v376, 128
          %v378 = vadd.s32 %v377, %v373
          %vm379 = vcmp.lt.s32.totalorder %v378, 256
          %v380 = vsel %vm379, %v359, 0.0
          %v381 = vadd.f32 %v380, 0.0
          %382 = vst [vmem:[%s225] sm:$0xff] %v381
        $region44: #{tpu_custom_call.1} parent=27 // pred_fallthru
          _
        %s383 = sand.u32 %s100, 1
        %s384 = scalar_lea.sflag [#allocation4], %s383
        %s385 = sand.u32 %s100, 1
        %s386 = smul.addr %s385, 8
        %s387 = scalar_lea.vmem [#allocation7], %s386
        // Predicated region
        $region45: #{tpu_custom_call.1} parent=27 // pred_check
          %p388 = pneg %p110
        $region46: #{tpu_custom_call.1} parent=27 // pred_check_branch
          %390 = sbr.rel (%p388) target = $region48
        $region47: #{tpu_custom_call.1} parent=27 // pred_region
          %392 = vsyncadd %s384, 0
          %s393 = sadd.s32 %s27, %s26
          %s394 = smul.addr %s393, 8
          %s395 = scalar_lea.hbm %s2, %s394
          %s397 = sshll.u32 %s387, 4
          %s398 = int_to_ptr.vmem [resolvable:$true] %s397
          %s399 = sshll.u32 %s395, 4
          %s400 = int_to_ptr.hbm [resolvable:$true] %s399
          %402 = dma.vmem_to_hbm [thread:$0]  %s398, 128, %s400, %s384
        $region48: #{tpu_custom_call.1} parent=27 // pred_fallthru
          _
      $region28: #{tpu_custom_call.1} parent=5 // pred_fallthru
        _
      %p403 = scmp.le.s32.totalorder 2, %s17
      // Predicated region
      $region49: #{tpu_custom_call.1} parent=5 // pred_check
        %p404 = pneg %p403
      $region50: #{tpu_custom_call.1} parent=5 // pred_check_branch
        %406 = sbr.rel (%p404) target = $region52
      $region51: #{tpu_custom_call.1} parent=5 // pred_region
        %s407 = ssub.s32 %s17, 2
        // Predicated region
        $region53: #{tpu_custom_call.1} parent=51 // pred_check
          %p408 = pneg %p116
        $region54: #{tpu_custom_call.1} parent=51 // pred_check_branch
          %410 = sbr.rel (%p408) target = $region56
        $region55: #{tpu_custom_call.1} parent=51 // pred_region
          %s411 = sand.u32 %s101, 1
          %s412 = scalar_lea.sflag [#allocation4], %s411
          %s413 = sand.u32 %s101, 1
          %s414 = smul.addr %s413, 8
          %s415 = scalar_lea.vmem [#allocation7], %s414
          %417 = dma.done %s412, 128
        $region56: #{tpu_custom_call.1} parent=51 // pred_fallthru
          _
      $region52: #{tpu_custom_call.1} parent=5 // pred_fallthru
        _
    $region6: #{tpu_custom_call.1} parent=1 // loop_footer
      %s21 = sadd.s32 1, %s17
    $region7: #{tpu_custom_call.1} parent=1 // loop_footer_branch
      %16 = sbr.rel target = $region3
    $region8: #{tpu_custom_call.1} parent=1 // loop_exit
      _
    %418 = vsyncpa [#allocation3], 1
    %s419 = scalar_lea.sflag [#allocation3], 1
    %420 = vsyncpa %s419, 1
    %421 = vsyncpa [#allocation6], 1
    %s422 = scalar_lea.sflag [#allocation6], 1
    %423 = vsyncpa %s422, 1
    %424 = vsyncpa [#allocation4], 1
    %s425 = scalar_lea.sflag [#allocation4], 1
    %426 = vsyncpa %s425, 1

</llo_original>
